<compile_context>
chip_gen: v6e
topology: v6e:2x2x1
jax: 0.10.0
libtpu: 0.0.40
codegen_flags: <defaults>
</compile_context>

<pallas_src>
import jax
import jax.numpy as jnp
from jax.experimental import pallas as pl
from jax.experimental.pallas import tpu as pltpu


def _round_up(n, m):
    return ((n + m - 1) // m) * m


def _mlp_kernel(x_ref, w1_ref, b1_ref, w2t_ref, scale_ref, b2_ref, o_ref,
                acc_ref):
    """One (batch-tile i, K-chunk k) grid step of the 2-layer MLP."""
    k = pl.program_id(1)

    @pl.when(k == 0)
    def _init():
        acc_ref[...] = jnp.zeros_like(acc_ref)

    # Layer 1 on the MXU: bf16 x bf16 -> f32 accumulation.  x is cast here
    # (cheap VPU op, hidden under the DMA); W1 arrives pre-packed (bf16/int8)
    # from prepare_params, so the wrapper does no per-call casts and no extra
    # HBM round trip.
    x_bf = x_ref[...].astype(jnp.bfloat16)
    w_bf = w1_ref[...].astype(jnp.bfloat16)
    acc_ref[...] += jnp.dot(x_bf, w_bf, preferred_element_type=jnp.float32)

    @pl.when(k == pl.num_programs(1) - 1)
    def _finalize():
        # Per-output-channel dequant scale (all-ones on the bf16 path), then
        # bias + ReLU in f32.
        h = jnp.maximum(acc_ref[...] * scale_ref[...] + b1_ref[...], 0.0)
        # Layer 2 (N=1): broadcast-multiply by the lane-dense (1, H) W2 row
        # and reduce along lanes (VPU + XLU) instead of a 1-column MXU matmul.
        z = jnp.sum(h * w2t_ref[...], axis=-1, keepdims=True) + b2_ref[0]
        # Exact sigmoid: exp goes to the EUP; saturates correctly for |z| big.
        o_ref[...] = (1.0 / (1.0 + jnp.exp(-z))).astype(o_ref.dtype)


def prepare_params(w1, b1, w2, b2, *, weight_dtype=jnp.bfloat16):
    """One-time parameter prep (cache the result; do NOT call per forward).

    Packs W1 for the HBM stream (bf16 default, int8 optional with per-channel
    scale) and lays out the small parameters the way the kernel wants them.
    """
    d, h = w1.shape
    w1 = w1.astype(jnp.float32)
    if weight_dtype == jnp.int8:
        # Symmetric per-output-channel int8 quantization; the scale is applied
        # as one VPU multiply on the f32 accumulator inside the kernel.
        amax = jnp.max(jnp.abs(w1), axis=0, keepdims=True)            # (1, H)
        scale = jnp.maximum(amax, 1e-12) / 127.0
        w1_p = jnp.clip(jnp.round(w1 / scale), -127.0, 127.0).astype(jnp.int8)
        scale = scale.astype(jnp.float32)
    else:
        w1_p = w1.astype(weight_dtype)
        scale = jnp.ones((1, h), jnp.float32)
    return dict(
        w1=w1_p,                                         # (D, H) bf16 or int8
        w1_scale=scale,                                  # (1, H) f32
        b1=b1.reshape(1, h).astype(jnp.float32),         # (1, H) f32
        w2t=w2.reshape(1, h).astype(jnp.float32),        # (1, H) f32, lane-dense
        b2=b2.reshape(1).astype(jnp.float32),            # (1,)  f32 -> SMEM
    )


def fake_video_detector(x, params, *, tb=None, tk=None, x_buffers=None):
    """Pallas forward pass of FakeVideoDetector.

    x:      (B, input_dim), f32 or bf16 (bf16 halves the activation stream).
    params: output of prepare_params().
    returns (B, 1) float32.
    """
    B, D = x.shape
    H = params["w1"].shape[1]

    # Batch tiling: lane/sublane-friendly tile up to 512 rows; pad B when it
    # does not divide instead of falling back to one giant tile.
    if tb is None:
        tb = min(512, _round_up(B, 8))
    tb = _round_up(tb, 8)
    Bp = _round_up(B, tb)
    n_btiles = Bp // tb

    # K tiling: with >= 2 batch tiles keep W1 fully resident (its block index
    # never changes, so it is fetched once and reused across the pipelined x
    # stream).  With a single batch tile, split K so the W1 DMA is
    # double-buffered against the MXU instead of a fully exposed prologue.
    if tk is None:
        if n_btiles >= 2:
            tk = D
        else:
            tk = 256 if D % 256 == 0 else D
    assert D % tk == 0 and (tk == D or tk % 128 == 0), (D, tk)
    n_ktiles = D // tk

    x_in = x if Bp == B else jnp.pad(x, ((0, Bp - B), (0, 0)))

    x_spec_kwargs = {}
    if x_buffers is not None:          # e.g. x_buffers=3 on v6e (near ridge)
        x_spec_kwargs["pipeline_mode"] = pl.Buffered(x_buffers)

    out = pl.pallas_call(
        _mlp_kernel,
        out_shape=jax.ShapeDtypeStruct((Bp, 1), jnp.float32),
        grid_spec=pltpu.PrefetchScalarGridSpec(
            num_scalar_prefetch=0,
            grid=(n_btiles, n_ktiles),
            in_specs=[
                pl.BlockSpec((tb, tk), lambda i, k: (i, k),
                             **x_spec_kwargs),               # x tile
                pl.BlockSpec((tk, H), lambda i, k: (k, 0)),  # W1 chunk/resident
                pl.BlockSpec((1, H), lambda i, k: (0, 0)),   # b1
                pl.BlockSpec((1, H), lambda i, k: (0, 0)),   # W2^T row
                pl.BlockSpec((1, H), lambda i, k: (0, 0)),   # W1 dequant scale
                pl.BlockSpec(memory_space=pltpu.MemorySpace.SMEM),  # b2 scalar
            ],
            out_specs=pl.BlockSpec((tb, 1), lambda i, k: (i, 0)),
            scratch_shapes=[pltpu.VMEM((tb, H), jnp.float32)],
        ),
        compiler_params=pltpu.CompilerParams(
            dimension_semantics=("parallel", "arbitrary"),
        ),
    )(x_in, params["w1"], params["b1"], params["w2t"], params["w1_scale"],
      params["b2"])

    return out if Bp == B else out[:B]


def reference(x, w1, b1, w2, b2):
    h = jnp.maximum(x @ w1 + b1, 0.0)
    return jax.nn.sigmoid(h @ w2 + b2)


if __name__ == "__main__":
    # Module default dims: input_dim=1792, hidden_dim=512 (lane-aligned).
    B, INPUT_DIM, HIDDEN_DIM = 8, 1792, 512

    key = jax.random.PRNGKey(0)
    kx, kw1, kb1, kw2, kb2 = jax.random.split(key, 5)

    x = jax.random.normal(kx, (B, INPUT_DIM), dtype=jnp.float32)
    # Deterministic synthetic parameters (nn.Linear-like scale).
    w1 = jax.random.uniform(kw1, (INPUT_DIM, HIDDEN_DIM), jnp.float32,
                            minval=-1.0, maxval=1.0) * (1.0 / (INPUT_DIM ** 0.5))
    b1 = jax.random.uniform(kb1, (HIDDEN_DIM,), jnp.float32,
                            minval=-1.0, maxval=1.0) * (1.0 / (INPUT_DIM ** 0.5))
    w2 = jax.random.uniform(kw2, (HIDDEN_DIM, 1), jnp.float32,
                            minval=-1.0, maxval=1.0) * (1.0 / (HIDDEN_DIM ** 0.5))
    b2 = jax.random.uniform(kb2, (1,), jnp.float32,
                            minval=-1.0, maxval=1.0) * (1.0 / (HIDDEN_DIM ** 0.5))

    # --- default (bf16 W1) path: one-time prep, no per-call casts -----------
    params = prepare_params(w1, b1, w2, b2)
    out = jax.block_until_ready(fake_video_detector(x, params))
    assert out.shape == (B, 1), out.shape

    # Check against a reference using the SAME bf16 quantization of x / W1
    # (the meaningful check; a fixed-atol f32 comparison is scale-dependent).
    x_q = x.astype(jnp.bfloat16).astype(jnp.float32)
    w1_q = w1.astype(jnp.bfloat16).astype(jnp.float32)
    ref_bf16 = reference(x_q, w1_q, b1, w2, b2)
    err = jnp.max(jnp.abs(out - ref_bf16))
    assert jnp.allclose(out, ref_bf16, atol=1e-4, rtol=1e-4), \
        f"bf16-matched max err {err}"

    # --- optional int8-packed W1 path (halves the W1 stream again) ----------
    params_i8 = prepare_params(w1, b1, w2, b2, weight_dtype=jnp.int8)
    out_i8 = jax.block_until_ready(fake_video_detector(x, params_i8))
    w1_deq = params_i8["w1"].astype(jnp.float32) * params_i8["w1_scale"]
    ref_i8 = reference(x_q, w1_deq, b1, w2, b2)
    err_i8 = jnp.max(jnp.abs(out_i8 - ref_i8))
    assert jnp.allclose(out_i8, ref_i8, atol=1e-3, rtol=1e-3), \
        f"int8-matched max err {err_i8}"

    print("KERNEL_OK")
</pallas_src>

<mosaic_0001>
module attributes {stable_mosaic.version = 11 : i64} {
  func.func @_mlp_kernel(%arg0: i32, %arg1: i32, %arg2: memref<8x256xf32, #tpu.memory_space<vmem>>, %arg3: memref<256x512xbf16, #tpu.memory_space<vmem>>, %arg4: memref<1x512xf32, #tpu.memory_space<vmem>>, %arg5: memref<1x512xf32, #tpu.memory_space<vmem>>, %arg6: memref<1x512xf32, #tpu.memory_space<vmem>>, %arg7: memref<1xf32, #tpu.memory_space<smem>>, %arg8: memref<8x1xf32, #tpu.memory_space<vmem>>, %arg9: memref<8x512xf32, #tpu.memory_space<vmem>>) attributes {dimension_semantics = [#tpu.dimension_semantics<parallel>, #tpu.dimension_semantics<arbitrary>], iteration_bounds = array<i64: 1, 7>, scalar_prefetch = 0 : i64, scratch_operands = 1 : i64, tpu.core_type = #tpu.core_type<tc>, window_params = [{transform_indices = @transform_0, window_bounds = array<i64: 8, 256>}, {transform_indices = @transform_1, window_bounds = array<i64: 256, 512>}, {pipeline_mode = #tpu.pipeline_mode<synchronous>, transform_indices = @transform_2, window_bounds = array<i64: 1, 512>}, {pipeline_mode = #tpu.pipeline_mode<synchronous>, transform_indices = @transform_3, window_bounds = array<i64: 1, 512>}, {pipeline_mode = #tpu.pipeline_mode<synchronous>, transform_indices = @transform_4, window_bounds = array<i64: 1, 512>}, {transform_indices = @transform_5, window_bounds = array<i64: 1>}, {transform_indices = @transform_6, window_bounds = array<i64: 8, 1>}]} {
    %c0_i32 = arith.constant 0 : i32
    %0 = arith.cmpi eq, %arg1, %c0_i32 : i32
    %1 = arith.extui %0 : i1 to i32
    %c0_i32_0 = arith.constant 0 : i32
    %2 = arith.cmpi ne, %1, %c0_i32_0 : i32
    scf.if %2 {
      %cst_9 = arith.constant 0.000000e+00 : f32
      %13 = vector.broadcast %cst_9 : f32 to vector<8x512xf32>
      %c0_10 = arith.constant 0 : index
      %c0_11 = arith.constant 0 : index
      %14 = vector.load %arg9[%c0_10, %c0_11] : memref<8x512xf32, #tpu.memory_space<vmem>>, vector<8x512xf32>
      tpu.vector_store %arg9[%c0_10, %c0_11], %13 {strides = array<i32>} : memref<8x512xf32, #tpu.memory_space<vmem>>, vector<8x512xf32>,
    } else {
    }
    %c0 = arith.constant 0 : index
    %c0_1 = arith.constant 0 : index
    %3 = vector.load %arg2[%c0, %c0_1] : memref<8x256xf32, #tpu.memory_space<vmem>>, vector<8x256xf32>
    %4 = arith.truncf %3 : vector<8x256xf32> to vector<8x256xbf16>
    %c0_2 = arith.constant 0 : index
    %c0_3 = arith.constant 0 : index
    %5 = vector.load %arg3[%c0_2, %c0_3] : memref<256x512xbf16, #tpu.memory_space<vmem>>, vector<256x512xbf16>
    %c0_4 = arith.constant 0 : index
    %c0_5 = arith.constant 0 : index
    %6 = vector.load %arg9[%c0_4, %c0_5] : memref<8x512xf32, #tpu.memory_space<vmem>>, vector<8x512xf32>
    %cst = arith.constant dense<0.000000e+00> : vector<8x512xf32>
    %7 = tpu.matmul %4, %5, %cst {dimension_numbers = #tpu.dot_dimension_numbers<[1], [0], [0], [1], [0, 0, 1, 1], [], []>} : vector<8x256xbf16>, vector<256x512xbf16>, vector<8x512xf32> -> vector<8x512xf32>
    %8 = arith.addf %6, %7 : vector<8x512xf32>
    %c0_6 = arith.constant 0 : index
    %c0_7 = arith.constant 0 : index
    %9 = vector.load %arg9[%c0_6, %c0_7] : memref<8x512xf32, #tpu.memory_space<vmem>>, vector<8x512xf32>
    tpu.vector_store %arg9[%c0_6, %c0_7], %8 {strides = array<i32>} : memref<8x512xf32, #tpu.memory_space<vmem>>, vector<8x512xf32>,
    %c6_i32 = arith.constant 6 : i32
    %10 = arith.cmpi eq, %arg1, %c6_i32 : i32
    %11 = arith.extui %10 : i1 to i32
    %c0_i32_8 = arith.constant 0 : i32
    %12 = arith.cmpi ne, %11, %c0_i32_8 : i32
    scf.if %12 {
      %c0_9 = arith.constant 0 : index
      %c0_10 = arith.constant 0 : index
      %13 = vector.load %arg9[%c0_9, %c0_10] : memref<8x512xf32, #tpu.memory_space<vmem>>, vector<8x512xf32>
      %c0_11 = arith.constant 0 : index
      %c0_12 = arith.constant 0 : index
      %14 = vector.load %arg6[%c0_11, %c0_12] : memref<1x512xf32, #tpu.memory_space<vmem>>, vector<1x512xf32>
      %15 = vector.broadcast %14 : vector<1x512xf32> to vector<8x512xf32>
      %16 = arith.mulf %13, %15 : vector<8x512xf32>
      %c0_13 = arith.constant 0 : index
      %c0_14 = arith.constant 0 : index
      %17 = vector.load %arg4[%c0_13, %c0_14] : memref<1x512xf32, #tpu.memory_space<vmem>>, vector<1x512xf32>
      %18 = vector.broadcast %17 : vector<1x512xf32> to vector<8x512xf32>
      %19 = arith.addf %16, %18 : vector<8x512xf32>
      %cst_15 = arith.constant 0.000000e+00 : f32
      %20 = vector.broadcast %cst_15 : f32 to vector<8x512xf32>
      %21 = arith.maximumf %19, %20 : vector<8x512xf32>
      %c0_16 = arith.constant 0 : index
      %c0_17 = arith.constant 0 : index
      %22 = vector.load %arg5[%c0_16, %c0_17] : memref<1x512xf32, #tpu.memory_space<vmem>>, vector<1x512xf32>
      %23 = vector.broadcast %22 : vector<1x512xf32> to vector<8x512xf32>
      %24 = arith.mulf %21, %23 : vector<8x512xf32>
      %cst_18 = arith.constant dense<0.000000e+00> : vector<8xf32>
      %25 = vector.multi_reduction <add>, %24, %cst_18 [1] : vector<8x512xf32> to vector<8xf32>
      %26 = vector.shape_cast %25 : vector<8xf32> to vector<8x1xf32>
      %c0_19 = arith.constant 0 : index
      %27 = memref.load %arg7[%c0_19] : memref<1xf32, #tpu.memory_space<smem>>
      %28 = vector.broadcast %27 : f32 to vector<8x1xf32>
      %29 = arith.addf %26, %28 : vector<8x1xf32>
      %cst_20 = arith.constant 0.000000e+00 : f32
      %30 = vector.broadcast %cst_20 : f32 to vector<8x1xf32>
      %31 = arith.subf %30, %29 : vector<8x1xf32>
      %32 = math.exp %31 : vector<8x1xf32>
      %cst_21 = arith.constant 1.000000e+00 : f32
      %33 = vector.broadcast %cst_21 : f32 to vector<8x1xf32>
      %34 = arith.addf %33, %32 : vector<8x1xf32>
      %cst_22 = arith.constant 1.000000e+00 : f32
      %35 = vector.broadcast %cst_22 : f32 to vector<8x1xf32>
      %36 = arith.divf %35, %34 : vector<8x1xf32>
      %c0_23 = arith.constant 0 : index
      %c0_24 = arith.constant 0 : index
      %37 = vector.load %arg8[%c0_23, %c0_24] : memref<8x1xf32, #tpu.memory_space<vmem>>, vector<8x1xf32>
      tpu.vector_store %arg8[%c0_23, %c0_24], %36 {strides = array<i32>} : memref<8x1xf32, #tpu.memory_space<vmem>>, vector<8x1xf32>,
    } else {
    }
    return
  }
  func.func @transform_0(%arg0: i32, %arg1: i32) -> (i32, i32) {
    %c0_i32 = arith.constant 0 : i32
    return %arg0, %arg1 : i32, i32
  }
  func.func @transform_1(%arg0: i32, %arg1: i32) -> (i32, i32) {
    %c0_i32 = arith.constant 0 : i32
    %c0_i32_0 = arith.constant 0 : i32
    return %arg1, %c0_i32 : i32, i32
  }
  func.func @transform_2(%arg0: i32, %arg1: i32) -> (i32, i32) {
    %c0_i32 = arith.constant 0 : i32
    %c0_i32_0 = arith.constant 0 : i32
    %c0_i32_1 = arith.constant 0 : i32
    return %c0_i32, %c0_i32_0 : i32, i32
  }
  func.func @transform_3(%arg0: i32, %arg1: i32) -> (i32, i32) {
    %c0_i32 = arith.constant 0 : i32
    %c0_i32_0 = arith.constant 0 : i32
    %c0_i32_1 = arith.constant 0 : i32
    return %c0_i32, %c0_i32_0 : i32, i32
  }
  func.func @transform_4(%arg0: i32, %arg1: i32) -> (i32, i32) {
    %c0_i32 = arith.constant 0 : i32
    %c0_i32_0 = arith.constant 0 : i32
    %c0_i32_1 = arith.constant 0 : i32
    return %c0_i32, %c0_i32_0 : i32, i32
  }
  func.func @transform_5(%arg0: i32, %arg1: i32) -> i32 {
    %c0_i32 = arith.constant 0 : i32
    %c0_i32_0 = arith.constant 0 : i32
    return %c0_i32 : i32
  }
  func.func @transform_6(%arg0: i32, %arg1: i32) -> (i32, i32) {
    %c0_i32 = arith.constant 0 : i32
    %c0_i32_0 = arith.constant 0 : i32
    return %arg0, %c0_i32 : i32, i32
  }
}

</mosaic_0001>

<llo_original>
// kernel: tpu_custom_call.1
$region0: #{tpu_custom_call.1}
  #allocation0 [shape = 'u32[]', space=smem, size = 0x4, offset = 0x4, fixed_abs, tag = 'smem constant byte address 0x4 - core index']
  #allocation1 [shape = 'u32[144,128]{1,0:T(1,128)}', space=vmem, size = 0x12000, scoped, tag = 'internal scratch']
  #allocation2 [shape = 'f32[8,512]{1,0:T(8,128)}', space=vmem, size = 0x4000, scoped, tag = 'scratch operand']
  #allocation3 [shape = 'f32[1]{0:T(128)S(6)}', space=smem, size = 0x200, scoped, tag = 'scoped memory for tpu_custom_call.1']
  %s0 = inlined_call_operand.hbm [shape: f32[8,1792], index: 0, kind: input, shape index: {}]
  %s1 = inlined_call_operand.hbm [shape: bf16[1792,512], index: 1, kind: input, shape index: {}]
  %s2 = inlined_call_operand.hbm [shape: f32[1,512], index: 2, kind: input, shape index: {}]
  %s3 = inlined_call_operand.hbm [shape: f32[1,512], index: 3, kind: input, shape index: {}]
  %s4 = inlined_call_operand.hbm [shape: f32[1,512], index: 4, kind: input, shape index: {}]
  %s5 = inlined_call_operand.<no memory space> [shape: f32[1], index: 5, kind: input, shape index: {}]
  %s6 = inlined_call_operand.vmem [shape: f32[8,1], index: 6, kind: output, shape index: {}]
  %s7 = sld [smem:[#allocation0]]
  $region85: #{tpu_custom_call.1} parent=0
    _
  %s9 = ssub.s32 1, %s7
  %s10 = scalar_select 0, %s9, %s7
  %11 = sst [smem:[#allocation3]] %s5
  $region1: #{tpu_custom_call.1} parent=0
    #allocation4 [shape = 'u8[16384]{0}', space=vmem, size = 0x4000, scoped, tag = 'input window, operand 0']
    #allocation5 [shape = 's32[2]{0}', space=sflag, size = 0x8, scoped, tag = 'scoped memory for tpu_custom_call.1']
    #allocation6 [shape = 'u8[524288]{0}', space=vmem, size = 0x80000, scoped, tag = 'input window, operand 1']
    #allocation7 [shape = 's32[2]{0}', space=sflag, size = 0x8, scoped, tag = 'scoped memory for tpu_custom_call.1']
    #allocation8 [shape = 'u8[2048]{0}', space=vmem, size = 0x800, scoped, tag = 'input window, operand 2, single buffered']
    #allocation9 [shape = 'u8[2048]{0}', space=vmem, size = 0x800, scoped, tag = 'input window, operand 3, single buffered']
    #allocation10 [shape = 's32[1]{0}', space=sflag, size = 0x4, scoped, tag = 'scoped memory for tpu_custom_call.1']
    #allocation11 [shape = 'u8[2048]{0}', space=vmem, size = 0x800, scoped, tag = 'input window, operand 4, single buffered']
    %12 = vsyncpa [#allocation5], 0
    %s13 = scalar_lea.sflag [#allocation5], 1
    %14 = vsyncpa %s13, 0
    %15 = vsyncpa [#allocation7], 0
    %s16 = scalar_lea.sflag [#allocation7], 1
    %17 = vsyncpa %s16, 0
    %18 = vsyncpa [#allocation10], 0
    loop: start=0, step=1, limit=9
    $region2: #{tpu_custom_call.1} parent=1 // loop_pre_header
      _
    $region3: #{tpu_custom_call.1} parent=1 // loop_header
      %s20 = sphi 0, %s24
      %p21 = scmp.ge.s32.totalorder %s20, 9
      %s27 = sphi 0, %s39
      %s28 = sphi 0, %s35
      %s29 = sphi 0, %s27
      %s30 = sphi 0, %s28
      %s31 = sphi 0, %s29
      %s32 = sphi 0, %s30
      %s44 = sphi 0, %s46
      %s47 = sphi 0, %s44
      %s48 = sphi 0, %s47
      %s64 = sphi 0, %s48
      %s70 = sphi 0, %s72
      %s73 = sphi 0, %s70
      %s74 = sphi 0, %s73
      %s90 = sphi 0, %s74
      %s94 = sphi 0, %s94
      %s96 = sphi 0, %s94
      %s97 = sphi 0, %s96
      %s111 = sphi 0, %s97
      %s115 = sphi 0, %s115
      %s117 = sphi 0, %s115
      %s118 = sphi 0, %s117
      %s132 = sphi 0, %s118
      %s136 = sphi 0, %s136
      %s138 = sphi 0, %s136
      %s139 = sphi 0, %s138
      %s153 = sphi 0, %s139
      %s157 = sphi 0, %s157
      %s159 = sphi 0, %s157
      %s160 = sphi 0, %s159
      %s174 = sphi 0, %s160
      %s180 = sphi 0, %s182
      %s183 = sphi 0, %s180
      %s184 = sphi 0, %s183
      %s200 = sphi 0, %s184
    $region4: #{tpu_custom_call.1} parent=1 // loop_header_branch
      %23 = sbr.rel (%p21) target = $region8
    $region5: #{tpu_custom_call.1} parent=1 // loop_body
      %s25 = ssub.s32 %s20, 1
      %s26 = ssub.s32 %s20, 2
      %s33 = sadd.s32 1, %s28
      %p34 = scmp.ge.s32.totalorder %s33, 7
      %s35 = scalar_select %p34, 0, %s33
      %s36 = sadd.s32 1, %s27
      %s37 = scalar_select %p34, %s36, %s27
      %p38 = scmp.ge.s32.totalorder %s37, 1
      %s39 = scalar_select %p38, 0, %s37
      %s40 = ssub.s32 %s27, %s39
      %s41 = ssub.s32 %s28, %s35
      %s42 = sor.u32 %s40, %s41
      %p43 = scmp.eq.s32.totalorder %s42, 0
      %s45 = sadd.s32 %s44, 1
      %s46 = scalar_select %p43, %s44, %s45
      %p49 = pneg %p43
      %p50 = scmp.eq.s32.totalorder %s20, 6
      %p51 = por %p49, %p50
      %p52 = scmp.ne.s32.totalorder %s44, %s47
      %p53 = scmp.eq.s32.totalorder %s20, 0
      %p54 = por %p52, %p53
      %p55 = scmp.ne.s32.totalorder %s44, %s47
      %p56 = scmp.eq.s32.totalorder %s25, 6
      %p57 = por %p55, %p56
      %p58 = scmp.ne.s32.totalorder %s47, %s48
      %p59 = scmp.eq.s32.totalorder %s25, 0
      %p60 = por %p58, %p59
      %p61 = scmp.ne.s32.totalorder %s47, %s48
      %p62 = scmp.eq.s32.totalorder %s26, 6
      %p63 = por %p61, %p62
      %p65 = scmp.ne.s32.totalorder %s48, %s64
      %p66 = scmp.eq.s32.totalorder %s26, 0
      %p67 = por %p65, %p66
      %s68 = ssub.s32 %s28, %s35
      %p69 = scmp.eq.s32.totalorder %s68, 0
      %s71 = sadd.s32 %s70, 1
      %s72 = scalar_select %p69, %s70, %s71
      %p75 = pneg %p69
      %p76 = scmp.eq.s32.totalorder %s20, 6
      %p77 = por %p75, %p76
      %p78 = scmp.ne.s32.totalorder %s70, %s73
      %p79 = scmp.eq.s32.totalorder %s20, 0
      %p80 = por %p78, %p79
      %p81 = scmp.ne.s32.totalorder %s70, %s73
      %p82 = scmp.eq.s32.totalorder %s25, 6
      %p83 = por %p81, %p82
      %p84 = scmp.ne.s32.totalorder %s73, %s74
      %p85 = scmp.eq.s32.totalorder %s25, 0
      %p86 = por %p84, %p85
      %p87 = scmp.ne.s32.totalorder %s73, %s74
      %p88 = scmp.eq.s32.totalorder %s26, 6
      %p89 = por %p87, %p88
      %p91 = scmp.ne.s32.totalorder %s74, %s90
      %p92 = scmp.eq.s32.totalorder %s26, 0
      %p93 = por %p91, %p92
      %s95 = sadd.s32 %s94, 1
      %p98 = scmp.eq.s32.totalorder %s20, 6
      %p99 = scmp.ne.s32.totalorder %s94, %s96
      %p100 = scmp.eq.s32.totalorder %s20, 0
      %p101 = por %p99, %p100
      %p102 = scmp.ne.s32.totalorder %s94, %s96
      %p103 = scmp.eq.s32.totalorder %s25, 6
      %p104 = por %p102, %p103
      %p105 = scmp.ne.s32.totalorder %s96, %s97
      %p106 = scmp.eq.s32.totalorder %s25, 0
      %p107 = por %p105, %p106
      %p108 = scmp.ne.s32.totalorder %s96, %s97
      %p109 = scmp.eq.s32.totalorder %s26, 6
      %p110 = por %p108, %p109
      %p112 = scmp.ne.s32.totalorder %s97, %s111
      %p113 = scmp.eq.s32.totalorder %s26, 0
      %p114 = por %p112, %p113
      %s116 = sadd.s32 %s115, 1
      %p119 = scmp.eq.s32.totalorder %s20, 6
      %p120 = scmp.ne.s32.totalorder %s115, %s117
      %p121 = scmp.eq.s32.totalorder %s20, 0
      %p122 = por %p120, %p121
      %p123 = scmp.ne.s32.totalorder %s115, %s117
      %p124 = scmp.eq.s32.totalorder %s25, 6
      %p125 = por %p123, %p124
      %p126 = scmp.ne.s32.totalorder %s117, %s118
      %p127 = scmp.eq.s32.totalorder %s25, 0
      %p128 = por %p126, %p127
      %p129 = scmp.ne.s32.totalorder %s117, %s118
      %p130 = scmp.eq.s32.totalorder %s26, 6
      %p131 = por %p129, %p130
      %p133 = scmp.ne.s32.totalorder %s118, %s132
      %p134 = scmp.eq.s32.totalorder %s26, 0
      %p135 = por %p133, %p134
      %s137 = sadd.s32 %s136, 1
      %p140 = scmp.eq.s32.totalorder %s20, 6
      %p141 = scmp.ne.s32.totalorder %s136, %s138
      %p142 = scmp.eq.s32.totalorder %s20, 0
      %p143 = por %p141, %p142
      %p144 = scmp.ne.s32.totalorder %s136, %s138
      %p145 = scmp.eq.s32.totalorder %s25, 6
      %p146 = por %p144, %p145
      %p147 = scmp.ne.s32.totalorder %s138, %s139
      %p148 = scmp.eq.s32.totalorder %s25, 0
      %p149 = por %p147, %p148
      %p150 = scmp.ne.s32.totalorder %s138, %s139
      %p151 = scmp.eq.s32.totalorder %s26, 6
      %p152 = por %p150, %p151
      %p154 = scmp.ne.s32.totalorder %s139, %s153
      %p155 = scmp.eq.s32.totalorder %s26, 0
      %p156 = por %p154, %p155
      %s158 = sadd.s32 %s157, 1
      %p161 = scmp.eq.s32.totalorder %s20, 6
      %p162 = scmp.ne.s32.totalorder %s157, %s159
      %p163 = scmp.eq.s32.totalorder %s20, 0
      %p164 = por %p162, %p163
      %p165 = scmp.ne.s32.totalorder %s157, %s159
      %p166 = scmp.eq.s32.totalorder %s25, 6
      %p167 = por %p165, %p166
      %p168 = scmp.ne.s32.totalorder %s159, %s160
      %p169 = scmp.eq.s32.totalorder %s25, 0
      %p170 = por %p168, %p169
      %p171 = scmp.ne.s32.totalorder %s159, %s160
      %p172 = scmp.eq.s32.totalorder %s26, 6
      %p173 = por %p171, %p172
      %p175 = scmp.ne.s32.totalorder %s160, %s174
      %p176 = scmp.eq.s32.totalorder %s26, 0
      %p177 = por %p175, %p176
      %s178 = ssub.s32 %s27, %s39
      %p179 = scmp.eq.s32.totalorder %s178, 0
      %s181 = sadd.s32 %s180, 1
      %s182 = scalar_select %p179, %s180, %s181
      %p185 = pneg %p179
      %p186 = scmp.eq.s32.totalorder %s20, 6
      %p187 = por %p185, %p186
      %p188 = scmp.ne.s32.totalorder %s180, %s183
      %p189 = scmp.eq.s32.totalorder %s20, 0
      %p190 = por %p188, %p189
      %p191 = scmp.ne.s32.totalorder %s180, %s183
      %p192 = scmp.eq.s32.totalorder %s25, 6
      %p193 = por %p191, %p192
      %p194 = scmp.ne.s32.totalorder %s183, %s184
      %p195 = scmp.eq.s32.totalorder %s25, 0
      %p196 = por %p194, %p195
      %p197 = scmp.ne.s32.totalorder %s183, %s184
      %p198 = scmp.eq.s32.totalorder %s26, 6
      %p199 = por %p197, %p198
      %p201 = scmp.ne.s32.totalorder %s184, %s200
      %p202 = scmp.eq.s32.totalorder %s26, 0
      %p203 = por %p201, %p202
      %p204 = scmp.le.s32.totalorder 1, %s20
      %p205 = scmp.lt.s32.totalorder %s20, 8
      %p206 = pnand %p204, %p205
      %p207 = pneg %p206
      // Predicated region
      $region9: #{tpu_custom_call.1} parent=5 // pred_check
        _
      $region10: #{tpu_custom_call.1} parent=5 // pred_check_branch
        %209 = sbr.rel (%p206) target = $region12
      $region11: #{tpu_custom_call.1} parent=5 // pred_region
        %s210 = ssub.s32 %s20, 1
        // Predicated region
        $region13: #{tpu_custom_call.1} parent=11 // pred_check
          %p211 = pneg %p107
        $region14: #{tpu_custom_call.1} parent=11 // pred_check_branch
          %213 = sbr.rel (%p211) target = $region16
        $region15: #{tpu_custom_call.1} parent=11 // pred_region
          %s215 = ssub.s32 64, 64
          %216 = vsyncadd [#allocation7], %s215
          %s218 = sshll.u32 [#allocation8], 4
          %s219 = int_to_ptr.vmem [resolvable:$true] %s218
          %221 = dma.hbm_to_vmem [thread:$0]  %s2, 64, %s219, [#allocation7]
        $region16: #{tpu_custom_call.1} parent=11 // pred_fallthru
          _
        // Predicated region
        $region17: #{tpu_custom_call.1} parent=11 // pred_check
          %p222 = pneg %p128
        $region18: #{tpu_custom_call.1} parent=11 // pred_check_branch
          %224 = sbr.rel (%p222) target = $region20
        $region19: #{tpu_custom_call.1} parent=11 // pred_region
          %s226 = ssub.s32 64, 64
          %227 = vsyncadd [#allocation10], %s226
          %s229 = sshll.u32 [#allocation9], 4
          %s230 = int_to_ptr.vmem [resolvable:$true] %s229
          %232 = dma.hbm_to_vmem [thread:$0]  %s3, 64, %s230, [#allocation10]
        $region20: #{tpu_custom_call.1} parent=11 // pred_fallthru
          _
        // Predicated region
        $region21: #{tpu_custom_call.1} parent=11 // pred_check
          %p233 = pneg %p149
        $region22: #{tpu_custom_call.1} parent=11 // pred_check_branch
          %235 = sbr.rel (%p233) target = $region24
        $region23: #{tpu_custom_call.1} parent=11 // pred_region
          %s237 = ssub.s32 64, 64
          %238 = vsyncadd [#allocation10], %s237
          %s240 = sshll.u32 [#allocation11], 4
          %s241 = int_to_ptr.vmem [resolvable:$true] %s240
          %243 = dma.hbm_to_vmem [thread:$0]  %s4, 64, %s241, [#allocation10]
        $region24: #{tpu_custom_call.1} parent=11 // pred_fallthru
          _
        // Predicated region
        $region25: #{tpu_custom_call.1} parent=11 // pred_check
          %p244 = pneg %p170
        $region26: #{tpu_custom_call.1} parent=11 // pred_check_branch
          %246 = sbr.rel (%p244) target = $region28
        $region27: #{tpu_custom_call.1} parent=11 // pred_region
          _
        $region28: #{tpu_custom_call.1} parent=11 // pred_fallthru
          _
      $region12: #{tpu_custom_call.1} parent=5 // pred_fallthru
        _
      %p247 = scmp.lt.s32.totalorder %s20, 7
      // Predicated region
      $region29: #{tpu_custom_call.1} parent=5 // pred_check
        %p248 = pneg %p247
      $region30: #{tpu_custom_call.1} parent=5 // pred_check_branch
        %250 = sbr.rel (%p248) target = $region32
      $region31: #{tpu_custom_call.1} parent=5 // pred_region
        // Predicated region
        $region33: #{tpu_custom_call.1} parent=31 // pred_check
          %p251 = pneg %p54
        $region34: #{tpu_custom_call.1} parent=31 // pred_check_branch
          %253 = sbr.rel (%p251) target = $region36
        $region35: #{tpu_custom_call.1} parent=31 // pred_region
          %s254 = sand.u32 %s44, 1
          %s255 = scalar_lea.sflag [#allocation5], %s254
          %s256 = sand.u32 %s44, 1
          %s257 = smul.addr %s256, 16
          %s258 = scalar_lea.vmem [#allocation4], %s257
          %s259 = smul.u32 2, %s28
          %s261 = ssub.s32 256, 256
          %262 = vsyncadd %s255, %s261
          %s263 = smul.addr %s27, 14
          %s264 = sadd.s32 %s259, %s263
          %s265 = smul.addr %s264, 128
          %s266 = scalar_lea.hbm %s0, %s265
          %s268 = sshll.u32 %s258, 4
          %s269 = int_to_ptr.vmem [resolvable:$true] %s268
          %271 = dma.hbm_to_vmem [thread:$0]  %s266, 256, %s269, %s255
        $region36: #{tpu_custom_call.1} parent=31 // pred_fallthru
          _
        // Predicated region
        $region37: #{tpu_custom_call.1} parent=31 // pred_check
          %p272 = pneg %p80
        $region38: #{tpu_custom_call.1} parent=31 // pred_check_branch
          %274 = sbr.rel (%p272) target = $region40
        $region39: #{tpu_custom_call.1} parent=31 // pred_region
          %s275 = sand.u32 %s20, 1
          %s276 = scalar_lea.sflag [#allocation7], %s275
          %s277 = sand.u32 %s70, 1
          %s278 = smul.addr %s277, 512
          %s279 = scalar_lea.vmem [#allocation6], %s278
          %s280 = smul.u32 32, %s28
          %s282 = ssub.s32 8192, 8192
          %283 = vsyncadd %s276, %s282
          %s284 = smul.addr %s280, 4
          %s285 = smul.addr %s284, 64
          %s286 = scalar_lea.hbm %s1, %s285
          %s287 = sshll.u32 %s279, 4
          %s288 = int_to_ptr.vmem [resolvable:$true] %s287
          %293 = dma.hbm_to_vmem [thread:$0]  %s286, 8192, %s288, %s276, 256, 256, 16
        $region40: #{tpu_custom_call.1} parent=31 // pred_fallthru
          _
      $region32: #{tpu_custom_call.1} parent=5 // pred_fallthru
        _
      %p294 = scmp.le.s32.totalorder 1, %s20
      %p295 = scmp.lt.s32.totalorder %s20, 8
      %p296 = pnand %p294, %p295
      %p297 = pneg %p296
      // Predicated region
      $region41: #{tpu_custom_call.1} parent=5 // pred_check
        _
      $region42: #{tpu_custom_call.1} parent=5 // pred_check_branch
        %299 = sbr.rel (%p296) target = $region44
      $region43: #{tpu_custom_call.1} parent=5 // pred_region
        %s300 = ssub.s32 %s20, 1
        %s301 = sand.u32 %s47, 1
        %s302 = scalar_lea.sflag [#allocation5], %s301
        %s303 = sand.u32 %s47, 1
        %s304 = smul.addr %s303, 16
        %s305 = scalar_lea.vmem [#allocation4], %s304
        // Predicated region
        $region45: #{tpu_custom_call.1} parent=43 // pred_check
          %p306 = pneg %p60
        $region46: #{tpu_custom_call.1} parent=43 // pred_check_branch
          %308 = sbr.rel (%p306) target = $region48
        $region47: #{tpu_custom_call.1} parent=43 // pred_region
          %309 = dma.done %s302, 256
        $region48: #{tpu_custom_call.1} parent=43 // pred_fallthru
          _
        %s310 = sand.u32 %s25, 1
        %s311 = scalar_lea.sflag [#allocation7], %s310
        %s312 = sand.u32 %s73, 1
        %s313 = smul.addr %s312, 512
        %s314 = scalar_lea.vmem [#allocation6], %s313
        // Predicated region
        $region49: #{tpu_custom_call.1} parent=43 // pred_check
          %p315 = pneg %p86
        $region50: #{tpu_custom_call.1} parent=43 // pred_check_branch
          %317 = sbr.rel (%p315) target = $region52
        $region51: #{tpu_custom_call.1} parent=43 // pred_region
          %318 = dma.done %s311, 8192
        $region52: #{tpu_custom_call.1} parent=43 // pred_fallthru
          _
        // Predicated region
        $region53: #{tpu_custom_call.1} parent=43 // pred_check
          %p319 = pneg %p107
        $region54: #{tpu_custom_call.1} parent=43 // pred_check_branch
          %321 = sbr.rel (%p319) target = $region56
        $region55: #{tpu_custom_call.1} parent=43 // pred_region
          %322 = dma.done [#allocation7], 64
        $region56: #{tpu_custom_call.1} parent=43 // pred_fallthru
          _
        // Predicated region
        $region57: #{tpu_custom_call.1} parent=43 // pred_check
          %p323 = pneg %p128
        $region58: #{tpu_custom_call.1} parent=43 // pred_check_branch
          %325 = sbr.rel (%p323) target = $region60
        $region59: #{tpu_custom_call.1} parent=43 // pred_region
          %326 = dma.done [#allocation10], 64
        $region60: #{tpu_custom_call.1} parent=43 // pred_fallthru
          _
        // Predicated region
        $region61: #{tpu_custom_call.1} parent=43 // pred_check
          %p327 = pneg %p149
        $region62: #{tpu_custom_call.1} parent=43 // pred_check_branch
          %329 = sbr.rel (%p327) target = $region64
        $region63: #{tpu_custom_call.1} parent=43 // pred_region
          %330 = dma.done [#allocation10], 64
        $region64: #{tpu_custom_call.1} parent=43 // pred_fallthru
          _
        %s331 = sand.u32 %s47, 1
        %s332 = scalar_lea.sflag [#allocation5], %s331
        %s333 = sand.u32 %s47, 1
        %s334 = smul.addr %s333, 16
        %s335 = scalar_lea.vmem [#allocation4], %s334
        %p336 = pneg %p60
        %p337 = pneg %p57
        %s338 = sand.u32 %s25, 1
        %s339 = scalar_lea.sflag [#allocation7], %s338
        %s340 = sand.u32 %s73, 1
        %s341 = smul.addr %s340, 512
        %s342 = scalar_lea.vmem [#allocation6], %s341
        %p343 = pneg %p86
        %p344 = pneg %p83
        %p345 = pneg %p107
        %p346 = pneg %p104
        %p347 = pneg %p128
        %p348 = pneg %p125
        %p349 = pneg %p149
        %p350 = pneg %p146
        %p351 = pneg %p170
        %p352 = pneg %p167
        %p353 = pneg %p196
        %p354 = pneg %p193
        %p355 = scmp.lt.s32.totalorder %s29, 0
        %s356 = scalar_select %p355, %s29, 0
        %s357 = smul.addr %s356, 8
        %s358 = scalar_lea.vmem %s6, %s357
        %s359 = smul.u32 2, %s30
        %s360 = smul.u32 32, %s30
        %p361 = scmp.lt.s32.totalorder %s29, 0
        %s362 = scalar_select %p361, %s29, 0
        %s363 = smul.addr %s362, 8
        %s364 = scalar_lea.vmem %s6, %s363
        %p365 = scmp.eq.s32.totalorder %s30, 0
        // Predicated region
        $region65: #{tpu_custom_call.1} parent=43 // pred_check
          %p366 = pneg %p365
        $region66: #{tpu_custom_call.1} parent=43 // pred_check_branch
          %368 = sbr.rel (%p366) target = $region68
        $region67: #{tpu_custom_call.1} parent=43 // pred_region
          %369 = vst [vmem:[#allocation2] sm:$0xff] 0.0
          %370 = vst [vmem:[#allocation2 + $0x8] sm:$0xff] 0.0
          %371 = vst [vmem:[#allocation2 + $0x10] sm:$0xff] 0.0
          %372 = vst [vmem:[#allocation2 + $0x18] sm:$0xff] 0.0
        $region68: #{tpu_custom_call.1} parent=43 // pred_fallthru
          _
        %v373 = vld [vmem:[%s305] sm:$0xff]
        %v374 = vld [vmem:[%s305 + $0x8] sm:$0xff]
        %v375 = vpack.c.bf16 %v373, %v373
        %v376 = vpack.c.bf16 %v374, %v374
        %v377 = vld [vmem:[%s314] sm:$0xff]
        %v378 = vld [vmem:[%s314 + $0x8] sm:$0xff]
        %v379 = vld [vmem:[%s314 + $0x10] sm:$0xff]
        %v380 = vld [vmem:[%s314 + $0x18] sm:$0xff]
        %v381 = vld [vmem:[%s314 + $0x20] sm:$0xff]
        %v382 = vld [vmem:[%s314 + $0x28] sm:$0xff]
        %v383 = vld [vmem:[%s314 + $0x30] sm:$0xff]
        %v384 = vld [vmem:[%s314 + $0x38] sm:$0xff]
        %v385 = vld [vmem:[%s314 + $0x40] sm:$0xff]
        %v386 = vld [vmem:[%s314 + $0x48] sm:$0xff]
        %v387 = vld [vmem:[%s314 + $0x50] sm:$0xff]
        %v388 = vld [vmem:[%s314 + $0x58] sm:$0xff]
        %v389 = vld [vmem:[%s314 + $0x60] sm:$0xff]
        %v390 = vld [vmem:[%s314 + $0x68] sm:$0xff]
        %v391 = vld [vmem:[%s314 + $0x70] sm:$0xff]
        %v392 = vld [vmem:[%s314 + $0x78] sm:$0xff]
        %v393 = vld [vmem:[%s314 + $0x80] sm:$0xff]
        %v394 = vld [vmem:[%s314 + $0x88] sm:$0xff]
        %v395 = vld [vmem:[%s314 + $0x90] sm:$0xff]
        %v396 = vld [vmem:[%s314 + $0x98] sm:$0xff]
        %v397 = vld [vmem:[%s314 + $0xa0] sm:$0xff]
        %v398 = vld [vmem:[%s314 + $0xa8] sm:$0xff]
        %v399 = vld [vmem:[%s314 + $0xb0] sm:$0xff]
        %v400 = vld [vmem:[%s314 + $0xb8] sm:$0xff]
        %v401 = vld [vmem:[%s314 + $0xc0] sm:$0xff]
        %v402 = vld [vmem:[%s314 + $0xc8] sm:$0xff]
        %v403 = vld [vmem:[%s314 + $0xd0] sm:$0xff]
        %v404 = vld [vmem:[%s314 + $0xd8] sm:$0xff]
        %v405 = vld [vmem:[%s314 + $0xe0] sm:$0xff]
        %v406 = vld [vmem:[%s314 + $0xe8] sm:$0xff]
        %v407 = vld [vmem:[%s314 + $0xf0] sm:$0xff]
        %v408 = vld [vmem:[%s314 + $0xf8] sm:$0xff]
        %v409 = vld [vmem:[%s314 + $0x100] sm:$0xff]
        %v410 = vld [vmem:[%s314 + $0x108] sm:$0xff]
        %v411 = vld [vmem:[%s314 + $0x110] sm:$0xff]
        %v412 = vld [vmem:[%s314 + $0x118] sm:$0xff]
        %v413 = vld [vmem:[%s314 + $0x120] sm:$0xff]
        %v414 = vld [vmem:[%s314 + $0x128] sm:$0xff]
        %v415 = vld [vmem:[%s314 + $0x130] sm:$0xff]
        %v416 = vld [vmem:[%s314 + $0x138] sm:$0xff]
        %v417 = vld [vmem:[%s314 + $0x140] sm:$0xff]
        %v418 = vld [vmem:[%s314 + $0x148] sm:$0xff]
        %v419 = vld [vmem:[%s314 + $0x150] sm:$0xff]
        %v420 = vld [vmem:[%s314 + $0x158] sm:$0xff]
        %v421 = vld [vmem:[%s314 + $0x160] sm:$0xff]
        %v422 = vld [vmem:[%s314 + $0x168] sm:$0xff]
        %v423 = vld [vmem:[%s314 + $0x170] sm:$0xff]
        %v424 = vld [vmem:[%s314 + $0x178] sm:$0xff]
        %v425 = vld [vmem:[%s314 + $0x180] sm:$0xff]
        %v426 = vld [vmem:[%s314 + $0x188] sm:$0xff]
        %v427 = vld [vmem:[%s314 + $0x190] sm:$0xff]
        %v428 = vld [vmem:[%s314 + $0x198] sm:$0xff]
        %v429 = vld [vmem:[%s314 + $0x1a0] sm:$0xff]
        %v430 = vld [vmem:[%s314 + $0x1a8] sm:$0xff]
        %v431 = vld [vmem:[%s314 + $0x1b0] sm:$0xff]
        %v432 = vld [vmem:[%s314 + $0x1b8] sm:$0xff]
        %v433 = vld [vmem:[%s314 + $0x1c0] sm:$0xff]
        %v434 = vld [vmem:[%s314 + $0x1c8] sm:$0xff]
        %v435 = vld [vmem:[%s314 + $0x1d0] sm:$0xff]
        %v436 = vld [vmem:[%s314 + $0x1d8] sm:$0xff]
        %v437 = vld [vmem:[%s314 + $0x1e0] sm:$0xff]
        %v438 = vld [vmem:[%s314 + $0x1e8] sm:$0xff]
        %v439 = vld [vmem:[%s314 + $0x1f0] sm:$0xff]
        %v440 = vld [vmem:[%s314 + $0x1f8] sm:$0xff]
        %v441 = vld [vmem:[#allocation2] sm:$0xff]
        %v442 = vld [vmem:[#allocation2 + $0x8] sm:$0xff]
        %v443 = vld [vmem:[#allocation2 + $0x10] sm:$0xff]
        %v444 = vld [vmem:[#allocation2 + $0x18] sm:$0xff]
        %v509 = vunpack.c.l.b16 %v377
        %v510 = vunpack.c.h.b16 %v377
        %v511 = vunpack.c.l.b16 %v378
        %v512 = vunpack.c.h.b16 %v378
        %v513 = vunpack.c.l.b16 %v379
        %v514 = vunpack.c.h.b16 %v379
        %v515 = vunpack.c.l.b16 %v380
        %v516 = vunpack.c.h.b16 %v380
        %v517 = vunpack.c.l.b16 %v381
        %v518 = vunpack.c.h.b16 %v381
        %v519 = vunpack.c.l.b16 %v382
        %v520 = vunpack.c.h.b16 %v382
        %v521 = vunpack.c.l.b16 %v383
        %v522 = vunpack.c.h.b16 %v383
        %v523 = vunpack.c.l.b16 %v384
        %v524 = vunpack.c.h.b16 %v384
        %v525 = vunpack.c.l.b16 %v385
        %v526 = vunpack.c.h.b16 %v385
        %v527 = vunpack.c.l.b16 %v386
        %v528 = vunpack.c.h.b16 %v386
        %v529 = vunpack.c.l.b16 %v387
        %v530 = vunpack.c.h.b16 %v387
        %v531 = vunpack.c.l.b16 %v388
        %v532 = vunpack.c.h.b16 %v388
        %v533 = vunpack.c.l.b16 %v389
        %v534 = vunpack.c.h.b16 %v389
        %v535 = vunpack.c.l.b16 %v390
        %v536 = vunpack.c.h.b16 %v390
        %v537 = vunpack.c.l.b16 %v391
        %v538 = vunpack.c.h.b16 %v391
        %v539 = vunpack.c.l.b16 %v392
        %v540 = vunpack.c.h.b16 %v392
        %v541 = vunpack.c.l.b16 %v393
        %v542 = vunpack.c.h.b16 %v393
        %v543 = vunpack.c.l.b16 %v394
        %v544 = vunpack.c.h.b16 %v394
        %v545 = vunpack.c.l.b16 %v395
        %v546 = vunpack.c.h.b16 %v395
        %v547 = vunpack.c.l.b16 %v396
        %v548 = vunpack.c.h.b16 %v396
        %v549 = vunpack.c.l.b16 %v397
        %v550 = vunpack.c.h.b16 %v397
        %v551 = vunpack.c.l.b16 %v398
        %v552 = vunpack.c.h.b16 %v398
        %v553 = vunpack.c.l.b16 %v399
        %v554 = vunpack.c.h.b16 %v399
        %v555 = vunpack.c.l.b16 %v400
        %v556 = vunpack.c.h.b16 %v400
        %v557 = vunpack.c.l.b16 %v401
        %v558 = vunpack.c.h.b16 %v401
        %v559 = vunpack.c.l.b16 %v402
        %v560 = vunpack.c.h.b16 %v402
        %v561 = vunpack.c.l.b16 %v403
        %v562 = vunpack.c.h.b16 %v403
        %v563 = vunpack.c.l.b16 %v404
        %v564 = vunpack.c.h.b16 %v404
        %v565 = vunpack.c.l.b16 %v405
        %v566 = vunpack.c.h.b16 %v405
        %v567 = vunpack.c.l.b16 %v406
        %v568 = vunpack.c.h.b16 %v406
        %v569 = vunpack.c.l.b16 %v407
        %v570 = vunpack.c.h.b16 %v407
        %v571 = vunpack.c.l.b16 %v408
        %v572 = vunpack.c.h.b16 %v408
        %v573 = vunpack.c.l.b16 %v409
        %v574 = vunpack.c.h.b16 %v409
        %v575 = vunpack.c.l.b16 %v410
        %v576 = vunpack.c.h.b16 %v410
        %v577 = vunpack.c.l.b16 %v411
        %v578 = vunpack.c.h.b16 %v411
        %v579 = vunpack.c.l.b16 %v412
        %v580 = vunpack.c.h.b16 %v412
        %v581 = vunpack.c.l.b16 %v413
        %v582 = vunpack.c.h.b16 %v413
        %v583 = vunpack.c.l.b16 %v414
        %v584 = vunpack.c.h.b16 %v414
        %v585 = vunpack.c.l.b16 %v415
        %v586 = vunpack.c.h.b16 %v415
        %v587 = vunpack.c.l.b16 %v416
        %v588 = vunpack.c.h.b16 %v416
        %v589 = vunpack.c.l.b16 %v417
        %v590 = vunpack.c.h.b16 %v417
        %v591 = vunpack.c.l.b16 %v418
        %v592 = vunpack.c.h.b16 %v418
        %v593 = vunpack.c.l.b16 %v419
        %v594 = vunpack.c.h.b16 %v419
        %v595 = vunpack.c.l.b16 %v420
        %v596 = vunpack.c.h.b16 %v420
        %v597 = vunpack.c.l.b16 %v421
        %v598 = vunpack.c.h.b16 %v421
        %v599 = vunpack.c.l.b16 %v422
        %v600 = vunpack.c.h.b16 %v422
        %v601 = vunpack.c.l.b16 %v423
        %v602 = vunpack.c.h.b16 %v423
        %v603 = vunpack.c.l.b16 %v424
        %v604 = vunpack.c.h.b16 %v424
        %v605 = vunpack.c.l.b16 %v425
        %v606 = vunpack.c.h.b16 %v425
        %v607 = vunpack.c.l.b16 %v426
        %v608 = vunpack.c.h.b16 %v426
        %v609 = vunpack.c.l.b16 %v427
        %v610 = vunpack.c.h.b16 %v427
        %v611 = vunpack.c.l.b16 %v428
        %v612 = vunpack.c.h.b16 %v428
        %v613 = vunpack.c.l.b16 %v429
        %v614 = vunpack.c.h.b16 %v429
        %v615 = vunpack.c.l.b16 %v430
        %v616 = vunpack.c.h.b16 %v430
        %v617 = vunpack.c.l.b16 %v431
        %v618 = vunpack.c.h.b16 %v431
        %v619 = vunpack.c.l.b16 %v432
        %v620 = vunpack.c.h.b16 %v432
        %v621 = vunpack.c.l.b16 %v433
        %v622 = vunpack.c.h.b16 %v433
        %v623 = vunpack.c.l.b16 %v434
        %v624 = vunpack.c.h.b16 %v434
        %v625 = vunpack.c.l.b16 %v435
        %v626 = vunpack.c.h.b16 %v435
        %v627 = vunpack.c.l.b16 %v436
        %v628 = vunpack.c.h.b16 %v436
        %v629 = vunpack.c.l.b16 %v437
        %v630 = vunpack.c.h.b16 %v437
        %v631 = vunpack.c.l.b16 %v438
        %v632 = vunpack.c.h.b16 %v438
        %v633 = vunpack.c.l.b16 %v439
        %v634 = vunpack.c.h.b16 %v439
        %v635 = vunpack.c.l.b16 %v440
        %v636 = vunpack.c.h.b16 %v440
        %v637 = vpack.c.b16 %v513, %v509
        %v638 = vpack.c.b16 %v514, %v510
        %v639 = vpack.c.b16 %v515, %v511
        %v640 = vpack.c.b16 %v516, %v512
        %v641 = vpack.c.b16 %v521, %v517
        %v642 = vpack.c.b16 %v522, %v518
        %v643 = vpack.c.b16 %v523, %v519
        %v644 = vpack.c.b16 %v524, %v520
        %v645 = vpack.c.b16 %v529, %v525
        %v646 = vpack.c.b16 %v530, %v526
        %v647 = vpack.c.b16 %v531, %v527
        %v648 = vpack.c.b16 %v532, %v528
        %v649 = vpack.c.b16 %v537, %v533
        %v650 = vpack.c.b16 %v538, %v534
        %v651 = vpack.c.b16 %v539, %v535
        %v652 = vpack.c.b16 %v540, %v536
        %v653 = vpack.c.b16 %v545, %v541
        %v654 = vpack.c.b16 %v546, %v542
        %v655 = vpack.c.b16 %v547, %v543
        %v656 = vpack.c.b16 %v548, %v544
        %v657 = vpack.c.b16 %v553, %v549
        %v658 = vpack.c.b16 %v554, %v550
        %v659 = vpack.c.b16 %v555, %v551
        %v660 = vpack.c.b16 %v556, %v552
        %v661 = vpack.c.b16 %v561, %v557
        %v662 = vpack.c.b16 %v562, %v558
        %v663 = vpack.c.b16 %v563, %v559
        %v664 = vpack.c.b16 %v564, %v560
        %v665 = vpack.c.b16 %v569, %v565
        %v666 = vpack.c.b16 %v570, %v566
        %v667 = vpack.c.b16 %v571, %v567
        %v668 = vpack.c.b16 %v572, %v568
        %v669 = vpack.c.b16 %v577, %v573
        %v670 = vpack.c.b16 %v578, %v574
        %v671 = vpack.c.b16 %v579, %v575
        %v672 = vpack.c.b16 %v580, %v576
        %v673 = vpack.c.b16 %v585, %v581
        %v674 = vpack.c.b16 %v586, %v582
        %v675 = vpack.c.b16 %v587, %v583
        %v676 = vpack.c.b16 %v588, %v584
        %v677 = vpack.c.b16 %v593, %v589
        %v678 = vpack.c.b16 %v594, %v590
        %v679 = vpack.c.b16 %v595, %v591
        %v680 = vpack.c.b16 %v596, %v592
        %v681 = vpack.c.b16 %v601, %v597
        %v682 = vpack.c.b16 %v602, %v598
        %v683 = vpack.c.b16 %v603, %v599
        %v684 = vpack.c.b16 %v604, %v600
        %v685 = vpack.c.b16 %v609, %v605
        %v686 = vpack.c.b16 %v610, %v606
        %v687 = vpack.c.b16 %v611, %v607
        %v688 = vpack.c.b16 %v612, %v608
        %v689 = vpack.c.b16 %v617, %v613
        %v690 = vpack.c.b16 %v618, %v614
        %v691 = vpack.c.b16 %v619, %v615
        %v692 = vpack.c.b16 %v620, %v616
        %v693 = vpack.c.b16 %v625, %v621
        %v694 = vpack.c.b16 %v626, %v622
        %v695 = vpack.c.b16 %v627, %v623
        %v696 = vpack.c.b16 %v628, %v624
        %v697 = vpack.c.b16 %v633, %v629
        %v698 = vpack.c.b16 %v634, %v630
        %v699 = vpack.c.b16 %v635, %v631
        %v700 = vpack.c.b16 %v636, %v632
        %765 = vmatprep.subr.bf16.mxu0 %v666
        %766 = vmatpush1.bf16.msra.mxu0 %v665
        %767 = vmatprep.subr.bf16.mxu0 %v662
        %768 = vmatpush1.bf16.msra.mxu0 %v661
        %769 = vmatprep.subr.bf16.mxu0 %v658
        %770 = vmatpush1.bf16.msra.mxu0 %v657
        %771 = vmatprep.subr.bf16.mxu0 %v654
        %772 = vmatpush1.bf16.msra.mxu0 %v653
        %773 = vmatprep.subr.bf16.mxu0 %v650
        %774 = vmatpush1.bf16.msra.mxu0 %v649
        %775 = vmatprep.subr.bf16.mxu0 %v646
        %776 = vmatpush1.bf16.msra.mxu0 %v645
        %777 = vmatprep.subr.bf16.mxu0 %v642
        %778 = vmatpush1.bf16.msra.mxu0 %v641
        %779 = vmatprep.subr.bf16.mxu0 %v638
        %780 = vmatpush1.bf16.msra.mxu0 %v637
        %781 = vmatprep.subr.bf16.mxu0 %v698
        %782 = vmatpush2.bf16.msra.mxu0 %v697
        %783 = vmatprep.subr.bf16.mxu0 %v694
        %784 = vmatpush2.bf16.msra.mxu0 %v693
        %785 = vmatprep.subr.bf16.mxu0 %v690
        %786 = vmatpush2.bf16.msra.mxu0 %v689
        %787 = vmatprep.subr.bf16.mxu0 %v686
        %788 = vmatpush2.bf16.msra.mxu0 %v685
        %789 = vmatprep.subr.bf16.mxu0 %v682
        %790 = vmatpush2.bf16.msra.mxu0 %v681
        %791 = vmatprep.subr.bf16.mxu0 %v678
        %792 = vmatpush2.bf16.msra.mxu0 %v677
        %793 = vmatprep.subr.bf16.mxu0 %v674
        %794 = vmatpush2.bf16.msra.mxu0 %v673
        %795 = vmatprep.subr.bf16.mxu0 %v670
        %796 = vmatpush2.bf16.msra.mxu0 %v669
        %797 = vmatprep.mubr.bf16.mxu0 %v376
        %798 = vmatmul.mubr.bf16.gmra.mxu0 %v375
        %v799 = vpop.f32.mrf.mxu0
        %v800 = vadd.f32 0.0, %v799
        %v801 = vpop.f32.mrf.mxu0
        %v802 = vadd.f32 0.0, %v801
        %v803 = vpop.f32.mrf.mxu0
        %v804 = vpop.f32.mrf.mxu0
        %805 = vdwg.mxu0
        %806 = vmatprep.subr.bf16.mxu0 %v668
        %807 = vmatpush1.bf16.msra.mxu0 %v667
        %808 = vmatprep.subr.bf16.mxu0 %v664
        %809 = vmatpush1.bf16.msra.mxu0 %v663
        %810 = vmatprep.subr.bf16.mxu0 %v660
        %811 = vmatpush1.bf16.msra.mxu0 %v659
        %812 = vmatprep.subr.bf16.mxu0 %v656
        %813 = vmatpush1.bf16.msra.mxu0 %v655
        %814 = vmatprep.subr.bf16.mxu0 %v652
        %815 = vmatpush1.bf16.msra.mxu0 %v651
        %816 = vmatprep.subr.bf16.mxu0 %v648
        %817 = vmatpush1.bf16.msra.mxu0 %v647
        %818 = vmatprep.subr.bf16.mxu0 %v644
        %819 = vmatpush1.bf16.msra.mxu0 %v643
        %820 = vmatprep.subr.bf16.mxu0 %v640
        %821 = vmatpush1.bf16.msra.mxu0 %v639
        %822 = vmatprep.subr.bf16.mxu0 %v700
        %823 = vmatpush2.bf16.msra.mxu0 %v699
        %824 = vmatprep.subr.bf16.mxu0 %v696
        %825 = vmatpush2.bf16.msra.mxu0 %v695
        %826 = vmatprep.subr.bf16.mxu0 %v692
        %827 = vmatpush2.bf16.msra.mxu0 %v691
        %828 = vmatprep.subr.bf16.mxu0 %v688
        %829 = vmatpush2.bf16.msra.mxu0 %v687
        %830 = vmatprep.subr.bf16.mxu0 %v684
        %831 = vmatpush2.bf16.msra.mxu0 %v683
        %832 = vmatprep.subr.bf16.mxu0 %v680
        %833 = vmatpush2.bf16.msra.mxu0 %v679
        %834 = vmatprep.subr.bf16.mxu0 %v676
        %835 = vmatpush2.bf16.msra.mxu0 %v675
        %836 = vmatprep.subr.bf16.mxu0 %v672
        %837 = vmatpush2.bf16.msra.mxu0 %v671
        %838 = vmatprep.mubr.bf16.mxu0 %v376
        %839 = vmatmul.mubr.bf16.gmra.mxu0 %v375
        %v840 = vpop.f32.mrf.mxu0
        %v841 = vadd.f32 0.0, %v840
        %v842 = vpop.f32.mrf.mxu0
        %v843 = vadd.f32 0.0, %v842
        %v844 = vpop.f32.mrf.mxu0
        %v845 = vpop.f32.mrf.mxu0
        %846 = vdwg.mxu0
        %v847 = vadd.f32 %v441, %v800
        %v848 = vadd.f32 %v442, %v802
        %v849 = vadd.f32 %v443, %v841
        %v850 = vadd.f32 %v444, %v843
        %851 = vst [vmem:[#allocation2] sm:$0xff] %v847
        %852 = vst [vmem:[#allocation2 + $0x8] sm:$0xff] %v848
        %853 = vst [vmem:[#allocation2 + $0x10] sm:$0xff] %v849
        %854 = vst [vmem:[#allocation2 + $0x18] sm:$0xff] %v850
        %p855 = scmp.eq.s32.totalorder %s30, 6
        // Predicated region
        $region69: #{tpu_custom_call.1} parent=43 // pred_check
          %p856 = pneg %p855
        $region70: #{tpu_custom_call.1} parent=43 // pred_check_branch
          %858 = sbr.rel (%p856) target = $region72
        $region71: #{tpu_custom_call.1} parent=43 // pred_region
          %v859 = vld [vmem:[#allocation2] sm:$0xff]
          %v860 = vld [vmem:[#allocation2 + $0x8] sm:$0xff]
          %v861 = vld [vmem:[#allocation2 + $0x10] sm:$0xff]
          %v862 = vld [vmem:[#allocation2 + $0x18] sm:$0xff]
          %v863 = vld [vmem:[#allocation11] sm:$0xf]
          %v865 = vlaneseq
          %v866 = vshrl.u32 %v865, 7
          %v867 = vsub.s32 0, %v866
          %v868 = vrot.slane %v863, %v867
          %v869 = vlaneseq
          %v870 = vshrl.u32 %v869, 7
          %v871 = vsub.s32 1, %v870
          %v872 = vrot.slane %v863, %v871
          %v873 = vlaneseq
          %v874 = vshrl.u32 %v873, 7
          %v875 = vsub.s32 2, %v874
          %v876 = vrot.slane %v863, %v875
          %v877 = vlaneseq
          %v878 = vshrl.u32 %v877, 7
          %v879 = vsub.s32 3, %v878
          %v880 = vrot.slane %v863, %v879
          %v885 = vmul.f32 %v859, %v868
          %v886 = vmul.f32 %v860, %v872
          %v887 = vmul.f32 %v861, %v876
          %v888 = vmul.f32 %v862, %v880
          %v889 = vld [vmem:[#allocation8] sm:$0xf]
          %v891 = vlaneseq
          %v892 = vshrl.u32 %v891, 7
          %v893 = vsub.s32 0, %v892
          %v894 = vrot.slane %v889, %v893
          %v895 = vlaneseq
          %v896 = vshrl.u32 %v895, 7
          %v897 = vsub.s32 1, %v896
          %v898 = vrot.slane %v889, %v897
          %v899 = vlaneseq
          %v900 = vshrl.u32 %v899, 7
          %v901 = vsub.s32 2, %v900
          %v902 = vrot.slane %v889, %v901
          %v903 = vlaneseq
          %v904 = vshrl.u32 %v903, 7
          %v905 = vsub.s32 3, %v904
          %v906 = vrot.slane %v889, %v905
          %v911 = vadd.f32 %v885, %v894
          %v912 = vadd.f32 %v886, %v898
          %v913 = vadd.f32 %v887, %v902
          %v914 = vadd.f32 %v888, %v906
          %v915 = vmax.f32 %v911, 0.0
          %v916 = vmax.f32 %v912, 0.0
          %v917 = vmax.f32 %v913, 0.0
          %v918 = vmax.f32 %v914, 0.0
          %v919 = vld [vmem:[#allocation9] sm:$0xf]
          %v921 = vlaneseq
          %v922 = vshrl.u32 %v921, 7
          %v923 = vsub.s32 0, %v922
          %v924 = vrot.slane %v919, %v923
          %v925 = vlaneseq
          %v926 = vshrl.u32 %v925, 7
          %v927 = vsub.s32 1, %v926
          %v928 = vrot.slane %v919, %v927
          %v929 = vlaneseq
          %v930 = vshrl.u32 %v929, 7
          %v931 = vsub.s32 2, %v930
          %v932 = vrot.slane %v919, %v931
          %v933 = vlaneseq
          %v934 = vshrl.u32 %v933, 7
          %v935 = vsub.s32 3, %v934
          %v936 = vrot.slane %v919, %v935
          %v941 = vmul.f32 %v915, %v924
          %v942 = vmul.f32 %v916, %v928
          %v943 = vmul.f32 %v917, %v932
          %v944 = vmul.f32 %v918, %v936
          %v945 = vadd.f32 %v941, %v942
          %v946 = vadd.f32 %v945, %v943
          %v947 = vadd.f32 %v946, %v944
          %948 = vadd.xlane.f32.xlu0 %v947
          %v949 = vpop.xlane.xlu0 %948
          %s950 = sld [smem:[#allocation3]]
          %v951 = vstv %s950
          %v952 = vadd.f32 %v949, %v951
          %v953 = vsub.f32 0.0, %v952
          %v954 = vmul.f32 %v953, 1.442695
          %v955 = vpow.pop %v954
          %v956 = vadd.f32 %v955, 1.0
          %v957 = vrcp.pop %v956
          %v958 = vmul.f32 1.0, %v957
          %vm959 = vcmask 7168
          %960 = vst.msk [vmem:[%s364] sm:$0xff] %vm959, %v958
        $region72: #{tpu_custom_call.1} parent=43 // pred_fallthru
          _
        %p961 = scmp.lt.s32.totalorder %s29, 0
        %s962 = scalar_select %p961, %s29, 0
        %s963 = smul.addr %s962, 8
        %s964 = scalar_lea.vmem %s6, %s963
        // Predicated region
        $region73: #{tpu_custom_call.1} parent=43 // pred_check
          %p965 = pneg %p193
        $region74: #{tpu_custom_call.1} parent=43 // pred_check_branch
          %967 = sbr.rel (%p965) target = $region76
        $region75: #{tpu_custom_call.1} parent=43 // pred_region
          _
        $region76: #{tpu_custom_call.1} parent=43 // pred_fallthru
          _
        // Predicated region
        $region77: #{tpu_custom_call.1} parent=43 // pred_check
          %p968 = pneg %p193
        $region78: #{tpu_custom_call.1} parent=43 // pred_check_branch
          %970 = sbr.rel (%p968) target = $region80
        $region79: #{tpu_custom_call.1} parent=43 // pred_region
          %p971 = scmp.lt.s32.totalorder %s29, 0
          %s972 = scalar_select %p971, %s29, 0
          %s973 = smul.addr %s972, 8
          %s974 = scalar_lea.vmem %s6, %s973
        $region80: #{tpu_custom_call.1} parent=43 // pred_fallthru
          _
      $region44: #{tpu_custom_call.1} parent=5 // pred_fallthru
        _
      %p975 = scmp.le.s32.totalorder 2, %s20
      // Predicated region
      $region81: #{tpu_custom_call.1} parent=5 // pred_check
        %p976 = pneg %p975
      $region82: #{tpu_custom_call.1} parent=5 // pred_check_branch
        %978 = sbr.rel (%p976) target = $region84
      $region83: #{tpu_custom_call.1} parent=5 // pred_region
        %s979 = ssub.s32 %s20, 2
      $region84: #{tpu_custom_call.1} parent=5 // pred_fallthru
        _
    $region6: #{tpu_custom_call.1} parent=1 // loop_footer
      %s24 = sadd.s32 1, %s20
    $region7: #{tpu_custom_call.1} parent=1 // loop_footer_branch
      %19 = sbr.rel target = $region3
    $region8: #{tpu_custom_call.1} parent=1 // loop_exit
      _
    %980 = vsyncpa [#allocation5], 1
    %s981 = scalar_lea.sflag [#allocation5], 1
    %982 = vsyncpa %s981, 1
    %983 = vsyncpa [#allocation7], 1
    %s984 = scalar_lea.sflag [#allocation7], 1
    %985 = vsyncpa %s984, 1
    %986 = vsyncpa [#allocation10], 1

</llo_original>
